<compile_context>
chip_gen: v7x
topology: tpu7x:2x2x1
jax: 0.10.0
libtpu: 0.0.40
codegen_flags: <defaults>
</compile_context>

<pallas_src>
import functools

import jax
import jax.numpy as jnp
from jax.experimental import pallas as pl
from jax.experimental.pallas import tpu as pltpu


def _mbstd_tiled_kernel(x_ref, o_ref, acc_ref, *, group_size, n_pass_tiles,
                        feat_total, eps):
    """Grid = (batch_blocks [parallel], feature_tiles [arbitrary]).

    x_ref  : (rows, T)  lane-dense chunk of the flattened (N, C*H*W) input
    o_ref  : (rows, T)  matching chunk of the flattened (N, (C+1)*H*W) output
    acc_ref: (rows // group_size, T) f32 per-group, per-lane partial std sums
    """
    j = pl.program_id(1)
    rows, t = x_ref.shape
    g_blk = rows // group_size

    @pl.when(j == 0)
    def _init():
        acc_ref[...] = jnp.zeros_like(acc_ref)

    @pl.when(j < n_pass_tiles)
    def _passthrough():
        x = x_ref[...]
        # Full-width (lane-dense) pass-through store of the original features.
        o_ref[...] = x.astype(o_ref.dtype)
        xf = x.astype(jnp.float32)
        inv_g = jnp.float32(1.0 / group_size)
        inv_gm1 = jnp.float32(1.0 / (group_size - 1))
        for g in range(g_blk):
            xg = xf[g * group_size:(g + 1) * group_size, :]            # (sub, T)
            mean = jnp.sum(xg, axis=0, keepdims=True) * inv_g          # (1, T)
            var = jnp.sum((xg - mean) ** 2, axis=0, keepdims=True) * inv_gm1
            std = jnp.sqrt(var + eps)                                  # (1, T)
            acc_ref[g:g + 1, :] = acc_ref[g:g + 1, :] + std

    @pl.when(j == n_pass_tiles)
    def _finalize():
        # All feature tiles accumulated: collapse each group's per-lane sums to
        # the scalar mean ONCE and cache it broadcast across the lane axis, so
        # every tail tile below is a plain sublane-broadcast store.
        inv_f = jnp.float32(1.0 / feat_total)
        for g in range(g_blk):
            s = jnp.sum(acc_ref[g:g + 1, :], keepdims=True) * inv_f    # (1, 1)
            acc_ref[g:g + 1, :] = jnp.broadcast_to(s, (1, t))

    @pl.when(j >= n_pass_tiles)
    def _extra_channel():
        # Appended channel: full-width slab filled with the per-group scalar.
        for g in range(g_blk):
            o_ref[g * group_size:(g + 1) * group_size, :] = jnp.broadcast_to(
                acc_ref[g:g + 1, :], (group_size, t)).astype(o_ref.dtype)


def _mbstd_flat_kernel(x_ref, o_ref, *, group_size, no_groups, f_in, hw, eps):
    """Fallback (H*W not 128-aligned): one whole flattened block per call."""
    x = x_ref[...]
    o_ref[:, :f_in] = x.astype(o_ref.dtype)
    xf = x.astype(jnp.float32)
    inv_g = jnp.float32(1.0 / group_size)
    inv_gm1 = jnp.float32(1.0 / (group_size - 1))
    inv_f = jnp.float32(1.0 / f_in)
    for g in range(no_groups):
        xg = xf[g * group_size:(g + 1) * group_size, :]
        mean = jnp.sum(xg, axis=0, keepdims=True) * inv_g
        var = jnp.sum((xg - mean) ** 2, axis=0, keepdims=True) * inv_gm1
        std = jnp.sqrt(var + eps)
        s = jnp.sum(std, keepdims=True) * inv_f                        # (1, 1)
        o_ref[g * group_size:(g + 1) * group_size, f_in:] = jnp.broadcast_to(
            s, (group_size, hw)).astype(o_ref.dtype)


def _pick_feature_tile(hw, rows, itemsize, budget_bytes=2 * 1024 * 1024):
    """Largest multiple of 128 dividing hw with rows*tile*itemsize <= budget."""
    if hw % 128 != 0:
        return None
    best = 128
    for t in range(128, hw + 1, 128):
        if hw % t == 0 and rows * t * itemsize <= budget_bytes:
            best = t
    return best


def minibatch_stddev(x, mini_batch_size: int = 4):
    n, c, h, w = x.shape
    sub = min(n, mini_batch_size)
    if n % sub != 0:
        sub = n
    no_groups = n // sub
    eps = 1e-8

    if sub <= 1:
        # Degenerate branch of the reference module: append a zero channel.
        y = jnp.zeros((n, 1, h, w), dtype=x.dtype)
        return jnp.concatenate([x, y], axis=1)

    hw = h * w
    f_in = c * hw                  # flattened input features per sample
    f_out = (c + 1) * hw           # flattened output features per sample
    itemsize = jnp.dtype(x.dtype).itemsize
    x2 = x.reshape(n, f_in)

    tile = _pick_feature_tile(hw, n, itemsize)

    if tile is None:
        # TODO(synk): H*W not 128-aligned -> whole-block, still lane-dense
        # fallback (fine for the small early-stage ProGAN feature maps).
        kernel = functools.partial(
            _mbstd_flat_kernel, group_size=sub, no_groups=no_groups,
            f_in=f_in, hw=hw, eps=eps)
        out2 = pl.pallas_call(
            kernel,
            out_shape=jax.ShapeDtypeStruct((n, f_out), x.dtype),
            grid=(1,),
            in_specs=[pl.BlockSpec((n, f_in), lambda i: (0, 0))],
            out_specs=pl.BlockSpec((n, f_out), lambda i: (0, 0)),
            compiler_params=pltpu.CompilerParams(
                dimension_semantics=("arbitrary",),
                vmem_limit_bytes=32 * 1024 * 1024),
        )(x2)
        return out2.reshape(n, c + 1, h, w)

    # Optional leading parallel axis: split the batch into 2 blocks of whole
    # groups when each block keeps >=8 rows (v7x dual TensorCores).
    n_par = 2 if (n % (2 * sub) == 0 and (n // 2) % 8 == 0) else 1
    rows = n // n_par
    g_blk = rows // sub

    n_pass_tiles = f_in // tile
    n_tail_tiles = hw // tile
    n_tiles = n_pass_tiles + n_tail_tiles

    kernel = functools.partial(
        _mbstd_tiled_kernel, group_size=sub, n_pass_tiles=n_pass_tiles,
        feat_total=f_in, eps=eps)

    cost = pl.CostEstimate(
        flops=3 * n * f_in,
        transcendentals=no_groups * f_in,
        bytes_accessed=(n * f_in + n * f_out) * itemsize)

    out2 = pl.pallas_call(
        kernel,
        out_shape=jax.ShapeDtypeStruct((n, f_out), x.dtype),
        grid=(n_par, n_tiles),
        in_specs=[pl.BlockSpec(
            (rows, tile),
            # Tail tiles have no matching input; clamp to the last pass tile
            # (same block index as the previous step -> no extra input DMA).
            lambda p, j: (p, jnp.minimum(j, n_pass_tiles - 1)))],
        out_specs=pl.BlockSpec((rows, tile), lambda p, j: (p, j)),
        scratch_shapes=[pltpu.VMEM((g_blk, tile), jnp.float32)],
        compiler_params=pltpu.CompilerParams(
            dimension_semantics=("parallel", "arbitrary"),
            vmem_limit_bytes=32 * 1024 * 1024),
        cost_estimate=cost,
    )(x2)
    return out2.reshape(n, c + 1, h, w)


def _reference(x, mini_batch_size: int = 4):
    """Pure-JAX mirror of the PyTorch forward."""
    n, c, h, w = x.shape
    sub = min(n, mini_batch_size)
    if n % sub != 0:
        sub = n
    g = n // sub
    if sub > 1:
        y = x.reshape(g, sub, c, h, w)
        std = jnp.sqrt(jnp.var(y, axis=1, ddof=1) + 1e-8)
        s = jnp.mean(std.reshape(g, -1), axis=1)
        yb = jnp.broadcast_to(
            s[:, None, None, None, None], (g, sub, 1, h, w)).reshape(n, 1, h, w)
    else:
        yb = jnp.zeros((n, 1, h, w), x.dtype)
    return jnp.concatenate([x, yb.astype(x.dtype)], axis=1)


if __name__ == "__main__":
    key = jax.random.PRNGKey(0)

    # Primary test: batch=8, channels=4, spatial=16 -> 128-aligned tiled path.
    x = jax.random.normal(key, (8, 4, 16, 16), dtype=jnp.float32)
    out = jax.block_until_ready(minibatch_stddev(x, mini_batch_size=4))
    ref = _reference(x, mini_batch_size=4)
    assert out.shape == ref.shape and out.dtype == ref.dtype
    assert jnp.allclose(out, ref, atol=1e-5, rtol=1e-5)

    # Secondary test: spatial=8 (H*W=64 not 128-aligned) -> whole-block fallback.
    x_small = jax.random.normal(jax.random.PRNGKey(0), (8, 4, 8, 8),
                                dtype=jnp.float32)
    out_small = jax.block_until_ready(minibatch_stddev(x_small, mini_batch_size=4))
    ref_small = _reference(x_small, mini_batch_size=4)
    assert out_small.shape == ref_small.shape and out_small.dtype == ref_small.dtype
    assert jnp.allclose(out_small, ref_small, atol=1e-5, rtol=1e-5)

    print("KERNEL_OK")
</pallas_src>

<mosaic_0001>
module attributes {stable_mosaic.version = 11 : i64} {
  func.func @_mbstd_tiled_kernel(%arg0: i32, %arg1: i32, %arg2: memref<8x256xf32, #tpu.memory_space<vmem>>, %arg3: memref<8x256xf32, #tpu.memory_space<vmem>>, %arg4: memref<2x256xf32, #tpu.memory_space<vmem>>) attributes {dimension_semantics = [#tpu.dimension_semantics<parallel>, #tpu.dimension_semantics<arbitrary>], iteration_bounds = array<i64: 1, 5>, scalar_prefetch = 0 : i64, scratch_operands = 1 : i64, tpu.core_type = #tpu.core_type<tc>, window_params = [{transform_indices = @transform_0, window_bounds = array<i64: 8, 256>}, {transform_indices = @transform_1, window_bounds = array<i64: 8, 256>}]} {
    %c0_i32 = arith.constant 0 : i32
    %0 = arith.cmpi eq, %arg1, %c0_i32 : i32
    %1 = arith.extui %0 : i1 to i32
    %c0_i32_0 = arith.constant 0 : i32
    %2 = arith.cmpi ne, %1, %c0_i32_0 : i32
    scf.if %2 {
      %cst = arith.constant 0.000000e+00 : f32
      %12 = vector.broadcast %cst : f32 to vector<2x256xf32>
      %c0 = arith.constant 0 : index
      %c0_6 = arith.constant 0 : index
      %13 = vector.load %arg4[%c0, %c0_6] : memref<2x256xf32, #tpu.memory_space<vmem>>, vector<2x256xf32>
      tpu.vector_store %arg4[%c0, %c0_6], %12 {strides = array<i32>} : memref<2x256xf32, #tpu.memory_space<vmem>>, vector<2x256xf32>,
    } else {
    }
    %c4_i32 = arith.constant 4 : i32
    %3 = arith.cmpi slt, %arg1, %c4_i32 : i32
    %4 = arith.extui %3 : i1 to i32
    %c0_i32_1 = arith.constant 0 : i32
    %5 = arith.cmpi ne, %4, %c0_i32_1 : i32
    scf.if %5 {
      %c0 = arith.constant 0 : index
      %c0_6 = arith.constant 0 : index
      %12 = vector.load %arg2[%c0, %c0_6] : memref<8x256xf32, #tpu.memory_space<vmem>>, vector<8x256xf32>
      %c0_7 = arith.constant 0 : index
      %c0_8 = arith.constant 0 : index
      %13 = vector.load %arg3[%c0_7, %c0_8] : memref<8x256xf32, #tpu.memory_space<vmem>>, vector<8x256xf32>
      tpu.vector_store %arg3[%c0_7, %c0_8], %12 {strides = array<i32>} : memref<8x256xf32, #tpu.memory_space<vmem>>, vector<8x256xf32>,
      %14 = vector.extract_strided_slice %12 {offsets = [0, 0], sizes = [4, 256], strides = [1, 1]} : vector<8x256xf32> to vector<4x256xf32>
      %cst = arith.constant dense<0.000000e+00> : vector<256xf32>
      %15 = vector.multi_reduction <add>, %14, %cst [0] : vector<4x256xf32> to vector<256xf32>
      %16 = vector.shape_cast %15 : vector<256xf32> to vector<1x256xf32>
      %cst_9 = arith.constant 2.500000e-01 : f32
      %17 = vector.broadcast %cst_9 : f32 to vector<1x256xf32>
      %18 = arith.mulf %16, %17 : vector<1x256xf32>
      %19 = vector.broadcast %18 : vector<1x256xf32> to vector<4x256xf32>
      %20 = arith.subf %14, %19 : vector<4x256xf32>
      %21 = arith.mulf %20, %20 : vector<4x256xf32>
      %cst_10 = arith.constant dense<0.000000e+00> : vector<256xf32>
      %22 = vector.multi_reduction <add>, %21, %cst_10 [0] : vector<4x256xf32> to vector<256xf32>
      %23 = vector.shape_cast %22 : vector<256xf32> to vector<1x256xf32>
      %cst_11 = arith.constant 0.333333343 : f32
      %24 = vector.broadcast %cst_11 : f32 to vector<1x256xf32>
      %25 = arith.mulf %23, %24 : vector<1x256xf32>
      %cst_12 = arith.constant 9.99999993E-9 : f32
      %26 = vector.broadcast %cst_12 : f32 to vector<1x256xf32>
      %27 = arith.addf %25, %26 : vector<1x256xf32>
      %28 = math.sqrt %27 : vector<1x256xf32>
      %c0_13 = arith.constant 0 : index
      %c0_14 = arith.constant 0 : index
      %29 = vector.load %arg4[%c0_13, %c0_14] : memref<2x256xf32, #tpu.memory_space<vmem>>, vector<1x256xf32>
      %30 = arith.addf %29, %28 : vector<1x256xf32>
      %c0_15 = arith.constant 0 : index
      %c0_16 = arith.constant 0 : index
      %31 = vector.load %arg4[%c0_15, %c0_16] : memref<2x256xf32, #tpu.memory_space<vmem>>, vector<1x256xf32>
      tpu.vector_store %arg4[%c0_15, %c0_16], %30 {strides = array<i32>} : memref<2x256xf32, #tpu.memory_space<vmem>>, vector<1x256xf32>,
      %32 = vector.extract_strided_slice %12 {offsets = [4, 0], sizes = [4, 256], strides = [1, 1]} : vector<8x256xf32> to vector<4x256xf32>
      %cst_17 = arith.constant dense<0.000000e+00> : vector<256xf32>
      %33 = vector.multi_reduction <add>, %32, %cst_17 [0] : vector<4x256xf32> to vector<256xf32>
      %34 = vector.shape_cast %33 : vector<256xf32> to vector<1x256xf32>
      %cst_18 = arith.constant 2.500000e-01 : f32
      %35 = vector.broadcast %cst_18 : f32 to vector<1x256xf32>
      %36 = arith.mulf %34, %35 : vector<1x256xf32>
      %37 = vector.broadcast %36 : vector<1x256xf32> to vector<4x256xf32>
      %38 = arith.subf %32, %37 : vector<4x256xf32>
      %39 = arith.mulf %38, %38 : vector<4x256xf32>
      %cst_19 = arith.constant dense<0.000000e+00> : vector<256xf32>
      %40 = vector.multi_reduction <add>, %39, %cst_19 [0] : vector<4x256xf32> to vector<256xf32>
      %41 = vector.shape_cast %40 : vector<256xf32> to vector<1x256xf32>
      %cst_20 = arith.constant 0.333333343 : f32
      %42 = vector.broadcast %cst_20 : f32 to vector<1x256xf32>
      %43 = arith.mulf %41, %42 : vector<1x256xf32>
      %cst_21 = arith.constant 9.99999993E-9 : f32
      %44 = vector.broadcast %cst_21 : f32 to vector<1x256xf32>
      %45 = arith.addf %43, %44 : vector<1x256xf32>
      %46 = math.sqrt %45 : vector<1x256xf32>
      %c1 = arith.constant 1 : index
      %c0_22 = arith.constant 0 : index
      %47 = vector.load %arg4[%c1, %c0_22] : memref<2x256xf32, #tpu.memory_space<vmem>>, vector<1x256xf32>
      %48 = arith.addf %47, %46 : vector<1x256xf32>
      %c1_23 = arith.constant 1 : index
      %c0_24 = arith.constant 0 : index
      %49 = vector.load %arg4[%c1_23, %c0_24] : memref<2x256xf32, #tpu.memory_space<vmem>>, vector<1x256xf32>
      tpu.vector_store %arg4[%c1_23, %c0_24], %48 {strides = array<i32>} : memref<2x256xf32, #tpu.memory_space<vmem>>, vector<1x256xf32>,
    } else {
    }
    %c4_i32_2 = arith.constant 4 : i32
    %6 = arith.cmpi eq, %arg1, %c4_i32_2 : i32
    %7 = arith.extui %6 : i1 to i32
    %c0_i32_3 = arith.constant 0 : i32
    %8 = arith.cmpi ne, %7, %c0_i32_3 : i32
    scf.if %8 {
      %c0 = arith.constant 0 : index
      %c0_6 = arith.constant 0 : index
      %12 = vector.load %arg4[%c0, %c0_6] : memref<2x256xf32, #tpu.memory_space<vmem>>, vector<1x256xf32>
      %13 = vector.shape_cast %12 : vector<1x256xf32> to vector<1x1x256xf32>
      %cst = arith.constant dense<0.000000e+00> : vector<1xf32>
      %14 = vector.multi_reduction <add>, %13, %cst [1, 2] : vector<1x1x256xf32> to vector<1xf32>
      %15 = vector.shape_cast %14 : vector<1xf32> to vector<1x1x1xf32>
      %16 = vector.extract %15[0, 0, 0] : f32 from vector<1x1x1xf32>
      %17 = vector.broadcast %16 : f32 to vector<1x1xf32>
      %cst_7 = arith.constant 9.765625E-4 : f32
      %18 = vector.broadcast %cst_7 : f32 to vector<1x1xf32>
      %19 = arith.mulf %17, %18 : vector<1x1xf32>
      %20 = vector.shape_cast %19 : vector<1x1xf32> to vector<1x1xf32>
      %21 = vector.broadcast %20 : vector<1x1xf32> to vector<1x256xf32>
      %c0_8 = arith.constant 0 : index
      %c0_9 = arith.constant 0 : index
      %22 = vector.load %arg4[%c0_8, %c0_9] : memref<2x256xf32, #tpu.memory_space<vmem>>, vector<1x256xf32>
      tpu.vector_store %arg4[%c0_8, %c0_9], %21 {strides = array<i32>} : memref<2x256xf32, #tpu.memory_space<vmem>>, vector<1x256xf32>,
      %c1 = arith.constant 1 : index
      %c0_10 = arith.constant 0 : index
      %23 = vector.load %arg4[%c1, %c0_10] : memref<2x256xf32, #tpu.memory_space<vmem>>, vector<1x256xf32>
      %24 = vector.shape_cast %23 : vector<1x256xf32> to vector<1x1x256xf32>
      %cst_11 = arith.constant dense<0.000000e+00> : vector<1xf32>
      %25 = vector.multi_reduction <add>, %24, %cst_11 [1, 2] : vector<1x1x256xf32> to vector<1xf32>
      %26 = vector.shape_cast %25 : vector<1xf32> to vector<1x1x1xf32>
      %27 = vector.extract %26[0, 0, 0] : f32 from vector<1x1x1xf32>
      %28 = vector.broadcast %27 : f32 to vector<1x1xf32>
      %cst_12 = arith.constant 9.765625E-4 : f32
      %29 = vector.broadcast %cst_12 : f32 to vector<1x1xf32>
      %30 = arith.mulf %28, %29 : vector<1x1xf32>
      %31 = vector.shape_cast %30 : vector<1x1xf32> to vector<1x1xf32>
      %32 = vector.broadcast %31 : vector<1x1xf32> to vector<1x256xf32>
      %c1_13 = arith.constant 1 : index
      %c0_14 = arith.constant 0 : index
      %33 = vector.load %arg4[%c1_13, %c0_14] : memref<2x256xf32, #tpu.memory_space<vmem>>, vector<1x256xf32>
      tpu.vector_store %arg4[%c1_13, %c0_14], %32 {strides = array<i32>} : memref<2x256xf32, #tpu.memory_space<vmem>>, vector<1x256xf32>,
    } else {
    }
    %c4_i32_4 = arith.constant 4 : i32
    %9 = arith.cmpi sge, %arg1, %c4_i32_4 : i32
    %10 = arith.extui %9 : i1 to i32
    %c0_i32_5 = arith.constant 0 : i32
    %11 = arith.cmpi ne, %10, %c0_i32_5 : i32
    scf.if %11 {
      %c0 = arith.constant 0 : index
      %c0_6 = arith.constant 0 : index
      %12 = vector.load %arg4[%c0, %c0_6] : memref<2x256xf32, #tpu.memory_space<vmem>>, vector<1x256xf32>
      %13 = vector.shape_cast %12 : vector<1x256xf32> to vector<1x256xf32>
      %14 = vector.broadcast %13 : vector<1x256xf32> to vector<4x256xf32>
      %c0_7 = arith.constant 0 : index
      %c0_8 = arith.constant 0 : index
      %15 = vector.load %arg3[%c0_7, %c0_8] : memref<8x256xf32, #tpu.memory_space<vmem>>, vector<4x256xf32>
      tpu.vector_store %arg3[%c0_7, %c0_8], %14 {strides = array<i32>} : memref<8x256xf32, #tpu.memory_space<vmem>>, vector<4x256xf32>,
      %c1 = arith.constant 1 : index
      %c0_9 = arith.constant 0 : index
      %16 = vector.load %arg4[%c1, %c0_9] : memref<2x256xf32, #tpu.memory_space<vmem>>, vector<1x256xf32>
      %17 = vector.shape_cast %16 : vector<1x256xf32> to vector<1x256xf32>
      %18 = vector.broadcast %17 : vector<1x256xf32> to vector<4x256xf32>
      %c4 = arith.constant 4 : index
      %c0_10 = arith.constant 0 : index
      %19 = vector.load %arg3[%c4, %c0_10] : memref<8x256xf32, #tpu.memory_space<vmem>>, vector<4x256xf32>
      tpu.vector_store %arg3[%c4, %c0_10], %18 {strides = array<i32>} : memref<8x256xf32, #tpu.memory_space<vmem>>, vector<4x256xf32>,
    } else {
    }
    return
  }
  func.func @transform_0(%arg0: i32, %arg1: i32) -> (i32, i32) {
    %c3_i32 = arith.constant 3 : i32
    %0 = arith.minsi %arg1, %c3_i32 : i32
    %c0_i32 = arith.constant 0 : i32
    return %arg0, %0 : i32, i32
  }
  func.func @transform_1(%arg0: i32, %arg1: i32) -> (i32, i32) {
    %c0_i32 = arith.constant 0 : i32
    return %arg0, %arg1 : i32, i32
  }
}

</mosaic_0001>

<llo_original>
// kernel: tpu_custom_call.1
$region0: #{tpu_custom_call.1}
  #allocation0 [shape = 'u32[]', space=smem, size = 0x4, offset = 0x4, fixed_abs, tag = 'smem constant byte address 0x4 - core index']
  #allocation1 [shape = 'u32[144,128]{1,0:T(1,128)}', space=vmem, size = 0x12000, scoped, tag = 'internal scratch']
  #allocation2 [shape = 'f32[2,256]{1,0:T(2,128)}', space=vmem, size = 0x800, scoped, tag = 'scratch operand']
  %s0 = inlined_call_operand.hbm [shape: f32[8,1024], index: 0, kind: input, shape index: {}]
  %s1 = inlined_call_operand.hbm [shape: f32[8,1280], index: 1, kind: output, shape index: {}]
  %s2 = sld [smem:[#allocation0]]
  $region57: #{tpu_custom_call.1} parent=0
    _
  %s4 = ssub.s32 1, %s2
  %s5 = scalar_select 0, %s4, %s2
  $region1: #{tpu_custom_call.1} parent=0
    #allocation3 [shape = 'u8[16384]{0}', space=vmem, size = 0x4000, scoped, tag = 'input window, operand 0']
    #allocation4 [shape = 's32[2]{0}', space=sflag, size = 0x8, scoped, tag = 'scoped memory for tpu_custom_call.1']
    #allocation5 [shape = 's32[2]{0}', space=sflag, size = 0x8, scoped, tag = 'scoped memory for tpu_custom_call.1']
    #allocation6 [shape = 'u8[16384]{0}', space=vmem, size = 0x4000, scoped, tag = 'output window, operand 0']
    %6 = vsyncpa [#allocation4], 0
    %s7 = scalar_lea.sflag [#allocation4], 1
    %8 = vsyncpa %s7, 0
    %9 = vsyncpa [#allocation5], 0
    %s10 = scalar_lea.sflag [#allocation5], 1
    %11 = vsyncpa %s10, 0
    loop: start=0, step=1, limit=7
    $region2: #{tpu_custom_call.1} parent=1 // loop_pre_header
      _
    $region3: #{tpu_custom_call.1} parent=1 // loop_header
      %s13 = sphi 0, %s17
      %p14 = scmp.ge.s32.totalorder %s13, 7
      %s20 = sphi 0, %s32
      %s21 = sphi 0, %s28
      %s22 = sphi 0, %s20
      %s23 = sphi 0, %s21
      %s24 = sphi 0, %s22
      %s25 = sphi 0, %s23
      %s41 = sphi 0, %s43
      %s44 = sphi 0, %s41
      %s45 = sphi 0, %s44
      %s61 = sphi 0, %s45
      %s69 = sphi 0, %s71
      %s72 = sphi 0, %s69
      %s73 = sphi 0, %s72
      %s89 = sphi 0, %s73
    $region4: #{tpu_custom_call.1} parent=1 // loop_header_branch
      %16 = sbr.rel (%p14) target = $region8
    $region5: #{tpu_custom_call.1} parent=1 // loop_body
      %s18 = ssub.s32 %s13, 1
      %s19 = ssub.s32 %s13, 2
      %s26 = sadd.s32 1, %s21
      %p27 = scmp.ge.s32.totalorder %s26, 5
      %s28 = scalar_select %p27, 0, %s26
      %s29 = sadd.s32 1, %s20
      %s30 = scalar_select %p27, %s29, %s20
      %p31 = scmp.ge.s32.totalorder %s30, 1
      %s32 = scalar_select %p31, 0, %s30
      %p33 = scmp.lt.s32.totalorder %s21, 3
      %s34 = scalar_select %p33, %s21, 3
      %p35 = scmp.lt.s32.totalorder %s28, 3
      %s36 = scalar_select %p35, %s28, 3
      %s37 = ssub.s32 %s20, %s32
      %s38 = ssub.s32 %s34, %s36
      %s39 = sor.u32 %s37, %s38
      %p40 = scmp.eq.s32.totalorder %s39, 0
      %s42 = sadd.s32 %s41, 1
      %s43 = scalar_select %p40, %s41, %s42
      %p46 = pneg %p40
      %p47 = scmp.eq.s32.totalorder %s13, 4
      %p48 = por %p46, %p47
      %p49 = scmp.ne.s32.totalorder %s41, %s44
      %p50 = scmp.eq.s32.totalorder %s13, 0
      %p51 = por %p49, %p50
      %p52 = scmp.ne.s32.totalorder %s41, %s44
      %p53 = scmp.eq.s32.totalorder %s18, 4
      %p54 = por %p52, %p53
      %p55 = scmp.ne.s32.totalorder %s44, %s45
      %p56 = scmp.eq.s32.totalorder %s18, 0
      %p57 = por %p55, %p56
      %p58 = scmp.ne.s32.totalorder %s44, %s45
      %p59 = scmp.eq.s32.totalorder %s19, 4
      %p60 = por %p58, %p59
      %p62 = scmp.ne.s32.totalorder %s45, %s61
      %p63 = scmp.eq.s32.totalorder %s19, 0
      %p64 = por %p62, %p63
      %s65 = ssub.s32 %s20, %s32
      %s66 = ssub.s32 %s21, %s28
      %s67 = sor.u32 %s65, %s66
      %p68 = scmp.eq.s32.totalorder %s67, 0
      %s70 = sadd.s32 %s69, 1
      %s71 = scalar_select %p68, %s69, %s70
      %p74 = pneg %p68
      %p75 = scmp.eq.s32.totalorder %s13, 4
      %p76 = por %p74, %p75
      %p77 = scmp.ne.s32.totalorder %s69, %s72
      %p78 = scmp.eq.s32.totalorder %s13, 0
      %p79 = por %p77, %p78
      %p80 = scmp.ne.s32.totalorder %s69, %s72
      %p81 = scmp.eq.s32.totalorder %s18, 4
      %p82 = por %p80, %p81
      %p83 = scmp.ne.s32.totalorder %s72, %s73
      %p84 = scmp.eq.s32.totalorder %s18, 0
      %p85 = por %p83, %p84
      %p86 = scmp.ne.s32.totalorder %s72, %s73
      %p87 = scmp.eq.s32.totalorder %s19, 4
      %p88 = por %p86, %p87
      %p90 = scmp.ne.s32.totalorder %s73, %s89
      %p91 = scmp.eq.s32.totalorder %s19, 0
      %p92 = por %p90, %p91
      %p93 = scmp.le.s32.totalorder 1, %s13
      %p94 = scmp.lt.s32.totalorder %s13, 6
      %p95 = pnand %p93, %p94
      %p96 = pneg %p95
      // Predicated region
      $region9: #{tpu_custom_call.1} parent=5 // pred_check
        _
      $region10: #{tpu_custom_call.1} parent=5 // pred_check_branch
        %98 = sbr.rel (%p95) target = $region12
      $region11: #{tpu_custom_call.1} parent=5 // pred_region
        %s99 = ssub.s32 %s13, 1
      $region12: #{tpu_custom_call.1} parent=5 // pred_fallthru
        _
      %p100 = scmp.lt.s32.totalorder %s13, 5
      // Predicated region
      $region13: #{tpu_custom_call.1} parent=5 // pred_check
        %p101 = pneg %p100
      $region14: #{tpu_custom_call.1} parent=5 // pred_check_branch
        %103 = sbr.rel (%p101) target = $region16
      $region15: #{tpu_custom_call.1} parent=5 // pred_region
        // Predicated region
        $region17: #{tpu_custom_call.1} parent=15 // pred_check
          %p104 = pneg %p51
        $region18: #{tpu_custom_call.1} parent=15 // pred_check_branch
          %106 = sbr.rel (%p104) target = $region20
        $region19: #{tpu_custom_call.1} parent=15 // pred_region
          %s107 = sand.u32 %s41, 1
          %s108 = scalar_lea.sflag [#allocation4], %s107
          %s109 = sand.u32 %s41, 1
          %s110 = smul.addr %s109, 16
          %s111 = scalar_lea.vmem [#allocation3], %s110
          %p112 = scmp.lt.s32.totalorder %s21, 3
          %s113 = scalar_select %p112, %s21, 3
          %s114 = smul.u32 2, %s113
          %s116 = ssub.s32 256, 256
          %117 = vsyncadd %s108, %s116
          %s118 = smul.addr %s20, 8
          %s119 = sadd.s32 %s114, %s118
          %s120 = smul.addr %s119, 128
          %s121 = scalar_lea.hbm %s0, %s120
          %s123 = sshll.u32 %s111, 4
          %s124 = int_to_ptr.vmem [resolvable:$true] %s123
          %126 = dma.hbm_to_vmem [thread:$0]  %s121, 256, %s124, %s108
        $region20: #{tpu_custom_call.1} parent=15 // pred_fallthru
          _
      $region16: #{tpu_custom_call.1} parent=5 // pred_fallthru
        _
      %p127 = scmp.le.s32.totalorder 1, %s13
      %p128 = scmp.lt.s32.totalorder %s13, 6
      %p129 = pnand %p127, %p128
      %p130 = pneg %p129
      // Predicated region
      $region21: #{tpu_custom_call.1} parent=5 // pred_check
        _
      $region22: #{tpu_custom_call.1} parent=5 // pred_check_branch
        %132 = sbr.rel (%p129) target = $region24
      $region23: #{tpu_custom_call.1} parent=5 // pred_region
        %s133 = ssub.s32 %s13, 1
        %s134 = sand.u32 %s44, 1
        %s135 = scalar_lea.sflag [#allocation4], %s134
        %s136 = sand.u32 %s44, 1
        %s137 = smul.addr %s136, 16
        %s138 = scalar_lea.vmem [#allocation3], %s137
        // Predicated region
        $region25: #{tpu_custom_call.1} parent=23 // pred_check
          %p139 = pneg %p57
        $region26: #{tpu_custom_call.1} parent=23 // pred_check_branch
          %141 = sbr.rel (%p139) target = $region28
        $region27: #{tpu_custom_call.1} parent=23 // pred_region
          %142 = dma.done %s135, 256
        $region28: #{tpu_custom_call.1} parent=23 // pred_fallthru
          _
        %s143 = sand.u32 %s44, 1
        %s144 = scalar_lea.sflag [#allocation4], %s143
        %s145 = sand.u32 %s44, 1
        %s146 = smul.addr %s145, 16
        %s147 = scalar_lea.vmem [#allocation3], %s146
        %p148 = pneg %p57
        %p149 = pneg %p54
        %p150 = pneg %p85
        %p151 = pneg %p82
        %s152 = sand.u32 %s72, 1
        %s153 = scalar_lea.sflag [#allocation5], %s152
        %s154 = sand.u32 %s72, 1
        %s155 = smul.addr %s154, 16
        %s156 = scalar_lea.vmem [#allocation6], %s155
        %p157 = scmp.lt.s32.totalorder %s23, 3
        %s158 = scalar_select %p157, %s23, 3
        %s159 = smul.u32 2, %s158
        %s160 = smul.u32 2, %s23
        %p161 = scmp.eq.s32.totalorder %s23, 0
        // Predicated region
        $region29: #{tpu_custom_call.1} parent=23 // pred_check
          %p162 = pneg %p161
        $region30: #{tpu_custom_call.1} parent=23 // pred_check_branch
          %164 = sbr.rel (%p162) target = $region32
        $region31: #{tpu_custom_call.1} parent=23 // pred_region
          %165 = vst [vmem:[#allocation2] sm:$0xf] 0.0
        $region32: #{tpu_custom_call.1} parent=23 // pred_fallthru
          _
        %p166 = scmp.lt.s32.totalorder %s23, 4
        // Predicated region
        $region33: #{tpu_custom_call.1} parent=23 // pred_check
          %p167 = pneg %p166
        $region34: #{tpu_custom_call.1} parent=23 // pred_check_branch
          %169 = sbr.rel (%p167) target = $region36
        $region35: #{tpu_custom_call.1} parent=23 // pred_region
          %v170 = vld [vmem:[%s138] sm:$0xff]
          %v171 = vld [vmem:[%s138 + $0x8] sm:$0xff]
          %172 = vst [vmem:[%s156] sm:$0xff] %v170
          %173 = vst [vmem:[%s156 + $0x8] sm:$0xff] %v171
          %vm174 = vcmask 1043456
          %v175 = vsel %vm174, %v170, 0.0
          %v176 = vrot.slane %v175, 4
          %v177 = vadd.f32 %v175, %v176
          %v178 = vrot.slane %v177, 2
          %v179 = vadd.f32 %v177, %v178
          %v180 = vrot.slane %v179, 1
          %v181 = vadd.f32 %v179, %v180
          %v182 = vsel %vm174, %v171, 0.0
          %v183 = vrot.slane %v182, 4
          %v184 = vadd.f32 %v182, %v183
          %v185 = vrot.slane %v184, 2
          %v186 = vadd.f32 %v184, %v185
          %v187 = vrot.slane %v186, 1
          %v188 = vadd.f32 %v186, %v187
          %v189 = vmul.f32 %v181, 0.25
          %v190 = vmul.f32 %v188, 0.25
          %v191 = vsub.f32 %v170, %v189
          %v192 = vsub.f32 %v171, %v190
          %v193 = vmul.f32 %v191, %v191
          %v194 = vmul.f32 %v192, %v192
          %v195 = vsel %vm174, %v193, 0.0
          %v196 = vrot.slane %v195, 4
          %v197 = vadd.f32 %v195, %v196
          %v198 = vrot.slane %v197, 2
          %v199 = vadd.f32 %v197, %v198
          %v200 = vrot.slane %v199, 1
          %v201 = vadd.f32 %v199, %v200
          %v202 = vsel %vm174, %v194, 0.0
          %v203 = vrot.slane %v202, 4
          %v204 = vadd.f32 %v202, %v203
          %v205 = vrot.slane %v204, 2
          %v206 = vadd.f32 %v204, %v205
          %v207 = vrot.slane %v206, 1
          %v208 = vadd.f32 %v206, %v207
          %v209 = vmul.f32 %v201, 0.33333334
          %v210 = vmul.f32 %v208, 0.33333334
          %v211 = vadd.f32 %v209, 1e-08
          %v212 = vadd.f32 %v210, 1e-08
          %v213 = vrsqrt.pop %v211
          %v214 = vmul.f32 %v211, %v213
          %vm215 = vcmp.eq.f32.partialorder %v211, inf
          %v216 = vsel %vm215, %v211, %v214
          %vm217 = vcmp.eq.f32.partialorder %v211, 0.0
          %v218 = vand.u32 %v211, 2147483648
          %v219 = vsel %vm217, %v218, %v216
          %v220 = vrsqrt.pop %v212
          %v221 = vmul.f32 %v212, %v220
          %vm222 = vcmp.eq.f32.partialorder %v212, inf
          %v223 = vsel %vm222, %v212, %v221
          %vm224 = vcmp.eq.f32.partialorder %v212, 0.0
          %v225 = vand.u32 %v212, 2147483648
          %v226 = vsel %vm224, %v225, %v223
          %v227 = vld [vmem:[#allocation2] ss:$2 sm:$0x3]
          %v230 = vcombine.low %v219, %v226
          %v232 = vunpack.c.l.s4 1966171168
          %v233 = vunpack.c.0.s8 %v232
          %v234 = vlaneseq
          %v235 = vshrl.u32 %v234, 7
          %v236 = vsub.s32 %v233, %v235
          %v237 = vrot.slane %v230, %v236
          %v239 = vunpack.c.l.s4 1966171168
          %v240 = vunpack.c.0.s8 %v239
          %v241 = vlaneseq
          %v242 = vshrl.u32 %v241, 7
          %v243 = vsub.s32 %v240, %v242
          %v244 = vrot.slane %v237, %v243
          %v246 = vadd.f32 %v227, %v244
          %v247 = vlaneseq
          %vm248 = vcmp.ge.s32.totalorder %v247, 0
          %vm249 = vcmp.lt.s32.totalorder %v247, 256
          %vm250 = vmand %vm248, %vm249
          %251 = vst.msk [vmem:[#allocation2] ss:$2 sm:$0x3] %vm250, %v246
          %v254 = vrot.slane %v170, 4
          %v255 = vrot.slane %v171, 4
          %v258 = vsel %vm174, %v254, 0.0
          %v259 = vrot.slane %v258, 4
          %v260 = vadd.f32 %v258, %v259
          %v261 = vrot.slane %v260, 2
          %v262 = vadd.f32 %v260, %v261
          %v263 = vrot.slane %v262, 1
          %v264 = vadd.f32 %v262, %v263
          %v265 = vsel %vm174, %v255, 0.0
          %v266 = vrot.slane %v265, 4
          %v267 = vadd.f32 %v265, %v266
          %v268 = vrot.slane %v267, 2
          %v269 = vadd.f32 %v267, %v268
          %v270 = vrot.slane %v269, 1
          %v271 = vadd.f32 %v269, %v270
          %v272 = vmul.f32 %v264, 0.25
          %v273 = vmul.f32 %v271, 0.25
          %v274 = vsub.f32 %v170, %v272
          %v275 = vsub.f32 %v171, %v273
          %v276 = vmul.f32 %v274, %v274
          %v277 = vmul.f32 %v275, %v275
          %v280 = vrot.slane %v276, 4
          %v281 = vrot.slane %v277, 4
          %v284 = vsel %vm174, %v280, 0.0
          %v285 = vrot.slane %v284, 4
          %v286 = vadd.f32 %v284, %v285
          %v287 = vrot.slane %v286, 2
          %v288 = vadd.f32 %v286, %v287
          %v289 = vrot.slane %v288, 1
          %v290 = vadd.f32 %v288, %v289
          %v291 = vsel %vm174, %v281, 0.0
          %v292 = vrot.slane %v291, 4
          %v293 = vadd.f32 %v291, %v292
          %v294 = vrot.slane %v293, 2
          %v295 = vadd.f32 %v293, %v294
          %v296 = vrot.slane %v295, 1
          %v297 = vadd.f32 %v295, %v296
          %v298 = vmul.f32 %v290, 0.33333334
          %v299 = vmul.f32 %v297, 0.33333334
          %v300 = vadd.f32 %v298, 1e-08
          %v301 = vadd.f32 %v299, 1e-08
          %v302 = vrsqrt.pop %v300
          %v303 = vmul.f32 %v300, %v302
          %vm304 = vcmp.eq.f32.partialorder %v300, inf
          %v305 = vsel %vm304, %v300, %v303
          %vm306 = vcmp.eq.f32.partialorder %v300, 0.0
          %v307 = vand.u32 %v300, 2147483648
          %v308 = vsel %vm306, %v307, %v305
          %v309 = vrsqrt.pop %v301
          %v310 = vmul.f32 %v301, %v309
          %vm311 = vcmp.eq.f32.partialorder %v301, inf
          %v312 = vsel %vm311, %v301, %v310
          %vm313 = vcmp.eq.f32.partialorder %v301, 0.0
          %v314 = vand.u32 %v301, 2147483648
          %v315 = vsel %vm313, %v314, %v312
          %s316 = scalar_lea.vmem [#allocation2], 1
          %v317 = vld [vmem:[%s316] ss:$2 sm:$0x3]
          %v320 = vcombine.low %v308, %v315
          %v322 = vunpack.c.l.s4 1966171168
          %v323 = vunpack.c.0.s8 %v322
          %v324 = vlaneseq
          %v325 = vshrl.u32 %v324, 7
          %v326 = vsub.s32 %v323, %v325
          %v327 = vrot.slane %v320, %v326
          %v329 = vunpack.c.l.s4 1966171168
          %v330 = vunpack.c.0.s8 %v329
          %v331 = vlaneseq
          %v332 = vshrl.u32 %v331, 7
          %v333 = vsub.s32 %v330, %v332
          %v334 = vrot.slane %v327, %v333
          %v336 = vadd.f32 %v317, %v334
          %337 = vst.msk [vmem:[%s316] ss:$2 sm:$0x3] %vm250, %v336
        $region36: #{tpu_custom_call.1} parent=23 // pred_fallthru
          _
        %p338 = scmp.eq.s32.totalorder %s23, 4
        // Predicated region
        $region37: #{tpu_custom_call.1} parent=23 // pred_check
          %p339 = pneg %p338
        $region38: #{tpu_custom_call.1} parent=23 // pred_check_branch
          %341 = sbr.rel (%p339) target = $region40
        $region39: #{tpu_custom_call.1} parent=23 // pred_region
          %v342 = vld [vmem:[#allocation2] ss:$2 sm:$0x3]
          %v344 = vlaneseq
          %v345 = vshrl.u32 %v344, 7
          %v346 = vsub.s32 0, %v345
          %v347 = vrot.slane %v342, %v346
          %v348 = vlaneseq
          %v349 = vshrl.u32 %v348, 7
          %v350 = vsub.s32 1, %v349
          %v351 = vrot.slane %v342, %v350
          %vm354 = vcmask 1040384
          %v355 = vsel %vm354, %v347, 0.0
          %v356 = vsel %vm354, %v351, 0.0
          %v357 = vadd.f32 %v355, %v356
          %358 = vadd.xlane.f32.xlu0 %v357
          %v359 = vpop.xlane.xlu0 %358
          %v360 = vrot.slane %v359, 4
          %v361 = vadd.f32 %v359, %v360
          %v362 = vrot.slane %v361, 2
          %v363 = vadd.f32 %v361, %v362
          %v364 = vrot.slane %v363, 1
          %v365 = vadd.f32 %v363, %v364
          %s366 = vtos %v365
          %v367 = vstv %s366
          %v368 = vmul.f32 %v367, 0.0009765625
          %v369 = vlaneseq
          %vm370 = vcmp.ge.s32.totalorder %v369, 0
          %vm371 = vcmp.lt.s32.totalorder %v369, 256
          %vm372 = vmand %vm370, %vm371
          %373 = vst.msk [vmem:[#allocation2] ss:$2 sm:$0x3] %vm372, %v368
          %s374 = scalar_lea.vmem [#allocation2], 1
          %v375 = vld [vmem:[%s374] ss:$2 sm:$0x3]
          %v377 = vlaneseq
          %v378 = vshrl.u32 %v377, 7
          %v379 = vsub.s32 0, %v378
          %v380 = vrot.slane %v375, %v379
          %v381 = vlaneseq
          %v382 = vshrl.u32 %v381, 7
          %v383 = vsub.s32 1, %v382
          %v384 = vrot.slane %v375, %v383
          %v387 = vsel %vm354, %v380, 0.0
          %v388 = vsel %vm354, %v384, 0.0
          %v389 = vadd.f32 %v387, %v388
          %390 = vadd.xlane.f32.xlu0 %v389
          %v391 = vpop.xlane.xlu0 %390
          %v392 = vrot.slane %v391, 4
          %v393 = vadd.f32 %v391, %v392
          %v394 = vrot.slane %v393, 2
          %v395 = vadd.f32 %v393, %v394
          %v396 = vrot.slane %v395, 1
          %v397 = vadd.f32 %v395, %v396
          %s398 = vtos %v397
          %v399 = vstv %s398
          %v400 = vmul.f32 %v399, 0.0009765625
          %401 = vst.msk [vmem:[%s374] ss:$2 sm:$0x3] %vm372, %v400
        $region40: #{tpu_custom_call.1} parent=23 // pred_fallthru
          _
        %p402 = scmp.ge.s32.totalorder %s23, 4
        // Predicated region
        $region41: #{tpu_custom_call.1} parent=23 // pred_check
          %p403 = pneg %p402
        $region42: #{tpu_custom_call.1} parent=23 // pred_check_branch
          %405 = sbr.rel (%p403) target = $region44
        $region43: #{tpu_custom_call.1} parent=23 // pred_region
          %v406 = vld [vmem:[#allocation2] ss:$2 sm:$0x3]
          %v408 = vlaneseq
          %v409 = vshrl.u32 %v408, 7
          %v410 = vsub.s32 0, %v409
          %v411 = vrot.slane %v406, %v410
          %v412 = vlaneseq
          %v413 = vshrl.u32 %v412, 7
          %v414 = vsub.s32 1, %v413
          %v415 = vrot.slane %v406, %v414
          %418 = vst [vmem:[%s156] sm:$0xf] %v411
          %419 = vst [vmem:[%s156 + $0x8] sm:$0xf] %v415
          %s420 = scalar_lea.vmem [#allocation2], 1
          %v421 = vld [vmem:[%s420] ss:$2 sm:$0x3]
          %v423 = vlaneseq
          %v424 = vshrl.u32 %v423, 7
          %v425 = vsub.s32 0, %v424
          %v426 = vrot.slane %v421, %v425
          %v427 = vlaneseq
          %v428 = vshrl.u32 %v427, 7
          %v429 = vsub.s32 1, %v428
          %v430 = vrot.slane %v421, %v429
          %433 = vst [vmem:[%s156] sm:$0xf0] %v426
          %434 = vst [vmem:[%s156 + $0x8] sm:$0xf0] %v430
        $region44: #{tpu_custom_call.1} parent=23 // pred_fallthru
          _
        %s435 = sand.u32 %s72, 1
        %s436 = scalar_lea.sflag [#allocation5], %s435
        %s437 = sand.u32 %s72, 1
        %s438 = smul.addr %s437, 16
        %s439 = scalar_lea.vmem [#allocation6], %s438
        // Predicated region
        $region45: #{tpu_custom_call.1} parent=23 // pred_check
          %p440 = pneg %p82
        $region46: #{tpu_custom_call.1} parent=23 // pred_check_branch
          %442 = sbr.rel (%p440) target = $region48
        $region47: #{tpu_custom_call.1} parent=23 // pred_region
          %s443 = smul.u32 2, %s23
          %s445 = ssub.s32 256, 256
          %446 = vsyncadd %s436, %s445
          %s447 = smul.addr %s22, 10
          %s448 = sadd.s32 %s443, %s447
          %s449 = smul.addr %s448, 128
          %s450 = scalar_lea.hbm %s1, %s449
          %s452 = sshll.u32 %s439, 4
          %s453 = int_to_ptr.vmem [resolvable:$true] %s452
          %455 = dma.vmem_to_hbm [thread:$0]  %s453, 256, %s450, %s436
        $region48: #{tpu_custom_call.1} parent=23 // pred_fallthru
          _
      $region24: #{tpu_custom_call.1} parent=5 // pred_fallthru
        _
      %p456 = scmp.le.s32.totalorder 2, %s13
      // Predicated region
      $region49: #{tpu_custom_call.1} parent=5 // pred_check
        %p457 = pneg %p456
      $region50: #{tpu_custom_call.1} parent=5 // pred_check_branch
        %459 = sbr.rel (%p457) target = $region52
      $region51: #{tpu_custom_call.1} parent=5 // pred_region
        %s460 = ssub.s32 %s13, 2
        // Predicated region
        $region53: #{tpu_custom_call.1} parent=51 // pred_check
          %p461 = pneg %p88
        $region54: #{tpu_custom_call.1} parent=51 // pred_check_branch
          %463 = sbr.rel (%p461) target = $region56
        $region55: #{tpu_custom_call.1} parent=51 // pred_region
          %s464 = sand.u32 %s73, 1
          %s465 = scalar_lea.sflag [#allocation5], %s464
          %s466 = sand.u32 %s73, 1
          %s467 = smul.addr %s466, 16
          %s468 = scalar_lea.vmem [#allocation6], %s467
          %469 = dma.done %s465, 256
        $region56: #{tpu_custom_call.1} parent=51 // pred_fallthru
          _
      $region52: #{tpu_custom_call.1} parent=5 // pred_fallthru
        _
    $region6: #{tpu_custom_call.1} parent=1 // loop_footer
      %s17 = sadd.s32 1, %s13
    $region7: #{tpu_custom_call.1} parent=1 // loop_footer_branch
      %12 = sbr.rel target = $region3
    $region8: #{tpu_custom_call.1} parent=1 // loop_exit
      _
    %470 = vsyncpa [#allocation4], 1
    %s471 = scalar_lea.sflag [#allocation4], 1
    %472 = vsyncpa %s471, 1
    %473 = vsyncpa [#allocation5], 1
    %s474 = scalar_lea.sflag [#allocation5], 1
    %475 = vsyncpa %s474, 1

</llo_original>
